<compile_context>
chip_gen: v5e
topology: v5e:2x2
jax: 0.10.0
libtpu: 0.0.40
codegen_flags: <defaults>
</compile_context>

<pallas_src>
import jax
import jax.numpy as jnp
from jax import lax
from jax.experimental import pallas as pl
from jax.experimental.pallas import tpu as pltpu


def _double_conv_kernel(x_ref, r1_ref, b1_ref, r2_ref, b2_ref, out_ref):
    # x_ref:   (nt, H, W*Cin)        lane-dense input images (f32)
    # r1_ref:  (3, W*Cin,  W*Cmid)   banded Toeplitz weights for conv1 (one per kh)
    # b1_ref:  (1, W*Cmid)           bias tiled across W (f32)
    # r2_ref:  (3, W*Cmid, W*Cout)   banded Toeplitz weights for conv2
    # b2_ref:  (1, W*Cout)
    # out_ref: (nt, H, W*Cout)       lane-dense output block
    nt, H, wcin = x_ref.shape
    rows = nt * H
    wcout = out_ref.shape[2]

    x = x_ref[...].reshape(rows, wcin)  # images stacked along matmul M

    # Per-image vertical (kh) boundary masks: rows y-1 / y+1 must not leak across
    # image boundaries when nt > 1 (redundant but harmless for nt == 1).
    row = lax.broadcasted_iota(jnp.int32, (rows, 1), 0)
    not_first = (row % H) != 0          # row y-1 exists within the same image
    not_last = (row % H) != (H - 1)     # row y+1 exists within the same image

    def band_conv(a, r_ref, b_ref):
        # a: (rows, W*C_in) lane-dense activations, f32.
        # One 3x3 conv (padding=1) + bias + ReLU as 3 accumulated banded matmuls:
        #   out = a[y-1] @ R0 + a[y] @ R1 + a[y+1] @ R2  (kw shifts folded into R).
        z = jnp.zeros((1, a.shape[1]), a.dtype)
        a_up = jnp.where(not_first, jnp.concatenate([z, a[:-1]], axis=0), 0.0)
        a_dn = jnp.where(not_last, jnp.concatenate([a[1:], z], axis=0), 0.0)
        wdt = r_ref.dtype  # bf16 or f32 MXU operands; accumulation stays f32
        acc = jnp.dot(a_up.astype(wdt), r_ref[0], preferred_element_type=jnp.float32)
        acc = acc + jnp.dot(a.astype(wdt), r_ref[1], preferred_element_type=jnp.float32)
        acc = acc + jnp.dot(a_dn.astype(wdt), r_ref[2], preferred_element_type=jnp.float32)
        return jnp.maximum(acc + b_ref[...], 0.0)  # bias + ReLU in f32 on the VPU

    h1 = band_conv(x, r1_ref, b1_ref)    # (rows, W*Cmid) f32
    h2 = band_conv(h1, r2_ref, b2_ref)   # (rows, W*Cout) f32

    out_ref[...] = h2.reshape(nt, H, wcout).astype(out_ref.dtype)


def _band_weights(w, W):
    """PyTorch (Cout, Cin, 3, 3) -> banded block-Toeplitz (3, W*Cin, W*Cout).

    R[kh, wi*Cin + ci, wo*Cout + co] = w[co, ci, kh, wi - wo + 1] when the kw index
    is in [0, 2], else 0 (realizes padding=1 along W inside the matmul RHS).
    """
    Cout, Cin, _, _ = w.shape
    wt = jnp.transpose(w, (2, 3, 1, 0))                       # (kh, kw, Cin, Cout)
    wi = jnp.arange(W)[:, None]
    wo = jnp.arange(W)[None, :]
    kw = wi - wo + 1                                          # (W, W)
    valid = ((kw >= 0) & (kw <= 2)).astype(w.dtype)[None, :, :, None, None]
    band = wt[:, jnp.clip(kw, 0, 2)]                          # (3, W, W, Cin, Cout)
    band = band * valid
    band = jnp.transpose(band, (0, 1, 3, 2, 4))               # (3, W, Cin, W, Cout)
    return band.reshape(3, W * Cin, W * Cout)


def _pick_images_per_step(n):
    """Largest divisor of n that keeps >=2 grid steps (v7x has 2 TensorCores)."""
    best = 1
    for nt in range(1, n + 1):
        if n % nt == 0 and n // nt >= 2:
            best = nt
    return best


def double_conv(x_nchw, w1, b1, w2, b2, *, mxu_dtype=jnp.float32):
    """x_nchw: (N, Cin, H, W); w*: PyTorch (Cout, Cin, 3, 3); b*: (Cout,)."""
    N, Cin, H, W = x_nchw.shape
    Cmid = w1.shape[0]
    Cout = w2.shape[0]

    # NCHW -> NHWC -> lane-dense (N, H, W*Cin).  (Layout plumbing only; see TODOs.)
    x = jnp.transpose(x_nchw, (0, 2, 3, 1)).reshape(N, H, W * Cin)

    r1 = _band_weights(w1, W).astype(mxu_dtype)               # (3, W*Cin,  W*Cmid)
    r2 = _band_weights(w2, W).astype(mxu_dtype)               # (3, W*Cmid, W*Cout)
    b1k = jnp.tile(b1, W).reshape(1, W * Cmid).astype(jnp.float32)
    b2k = jnp.tile(b2, W).reshape(1, W * Cout).astype(jnp.float32)

    nt = _pick_images_per_step(N)
    grid_n = N // nt

    out = pl.pallas_call(
        _double_conv_kernel,
        out_shape=jax.ShapeDtypeStruct((N, H, W * Cout), x_nchw.dtype),
        grid_spec=pltpu.PrefetchScalarGridSpec(
            num_scalar_prefetch=0,
            grid=(grid_n,),   # nt images per step, >=2 steps when N >= 2 (v7x TCs)
            in_specs=[
                pl.BlockSpec((nt, H, W * Cin), lambda n: (n, 0, 0)),
                pl.BlockSpec((3, W * Cin, W * Cmid), lambda n: (0, 0, 0)),
                pl.BlockSpec((1, W * Cmid), lambda n: (0, 0)),
                pl.BlockSpec((3, W * Cmid, W * Cout), lambda n: (0, 0, 0)),
                pl.BlockSpec((1, W * Cout), lambda n: (0, 0)),
            ],
            out_specs=pl.BlockSpec((nt, H, W * Cout), lambda n: (n, 0, 0)),
        ),
        compiler_params=pltpu.CompilerParams(dimension_semantics=("parallel",)),
    )(x, r1, b1k, r2, b2k)

    # (N, H, W*Cout) -> (N, H, W, Cout) -> NCHW
    return jnp.transpose(out.reshape(N, H, W, Cout), (0, 3, 1, 2))


def _ref_double_conv(x_nchw, w1, b1, w2, b2):
    dn = ("NCHW", "OIHW", "NCHW")
    y = lax.conv_general_dilated(x_nchw, w1, (1, 1), ((1, 1), (1, 1)),
                                 dimension_numbers=dn)
    y = jnp.maximum(y + b1.reshape(1, -1, 1, 1), 0.0)
    y = lax.conv_general_dilated(y, w2, (1, 1), ((1, 1), (1, 1)),
                                 dimension_numbers=dn)
    return jnp.maximum(y + b2.reshape(1, -1, 1, 1), 0.0)


if __name__ == "__main__":
    N, Cin, Cout, H, W = 2, 4, 8, 16, 16

    key = jax.random.PRNGKey(0)
    kx, k1, k2, k3, k4 = jax.random.split(key, 5)

    x = jax.random.normal(kx, (N, Cin, H, W), jnp.float32)

    # deterministic, PyTorch-like uniform init: bound = 1/sqrt(fan_in)
    bound1 = 1.0 / (Cin * 9) ** 0.5
    w1 = jax.random.uniform(k1, (Cout, Cin, 3, 3), jnp.float32, -bound1, bound1)
    b1 = jax.random.uniform(k2, (Cout,), jnp.float32, -bound1, bound1)
    bound2 = 1.0 / (Cout * 9) ** 0.5
    w2 = jax.random.uniform(k3, (Cout, Cout, 3, 3), jnp.float32, -bound2, bound2)
    b2 = jax.random.uniform(k4, (Cout,), jnp.float32, -bound2, bound2)

    ref = jax.block_until_ready(_ref_double_conv(x, w1, b1, w2, b2))

    # f32 MXU operands (default at this toy shape): strict tolerance.
    out = jax.block_until_ready(double_conv(x, w1, b1, w2, b2))
    assert out.shape == (N, Cout, H, W), out.shape
    assert jnp.allclose(out, ref, atol=1e-4, rtol=1e-4), float(jnp.abs(out - ref).max())

    # bf16 MXU operands (production path per perf review): looser tolerance.
    out_bf16 = jax.block_until_ready(
        double_conv(x, w1, b1, w2, b2, mxu_dtype=jnp.bfloat16))
    assert jnp.allclose(out_bf16, ref, atol=5e-2, rtol=5e-2), \
        float(jnp.abs(out_bf16 - ref).max())

    print("KERNEL_OK")
</pallas_src>

<mosaic_0001>
module attributes {stable_mosaic.version = 11 : i64} {
  func.func @_double_conv_kernel(%arg0: i32, %arg1: memref<1x16x64xf32, #tpu.memory_space<vmem>>, %arg2: memref<3x64x128xf32, #tpu.memory_space<vmem>>, %arg3: memref<1x128xf32, #tpu.memory_space<vmem>>, %arg4: memref<3x128x128xf32, #tpu.memory_space<vmem>>, %arg5: memref<1x128xf32, #tpu.memory_space<vmem>>, %arg6: memref<1x16x128xf32, #tpu.memory_space<vmem>>) attributes {dimension_semantics = [#tpu.dimension_semantics<parallel>], iteration_bounds = array<i64: 2>, scalar_prefetch = 0 : i64, scratch_operands = 0 : i64, tpu.core_type = #tpu.core_type<tc>, window_params = [{transform_indices = @transform_0, window_bounds = array<i64: 1, 16, 64>}, {pipeline_mode = #tpu.pipeline_mode<synchronous>, transform_indices = @transform_1, window_bounds = array<i64: 3, 64, 128>}, {pipeline_mode = #tpu.pipeline_mode<synchronous>, transform_indices = @transform_2, window_bounds = array<i64: 1, 128>}, {pipeline_mode = #tpu.pipeline_mode<synchronous>, transform_indices = @transform_3, window_bounds = array<i64: 3, 128, 128>}, {pipeline_mode = #tpu.pipeline_mode<synchronous>, transform_indices = @transform_4, window_bounds = array<i64: 1, 128>}, {transform_indices = @transform_5, window_bounds = array<i64: 1, 16, 128>}]} {
    %c0 = arith.constant 0 : index
    %c0_0 = arith.constant 0 : index
    %c0_1 = arith.constant 0 : index
    %0 = vector.load %arg1[%c0, %c0_0, %c0_1] : memref<1x16x64xf32, #tpu.memory_space<vmem>>, vector<1x16x64xf32>
    %1 = vector.shape_cast %0 : vector<1x16x64xf32> to vector<16x64xf32>
    %2 = tpu.iota {dimensions = array<i32: 0>} : vector<16x1xi32>
    %c16_i32 = arith.constant 16 : i32
    %c0_i32 = arith.constant 0 : i32
    %3 = arith.cmpi eq, %c16_i32, %c0_i32 : i32
    %c1_i32 = arith.constant 1 : i32
    %4 = arith.select %3, %c1_i32, %c16_i32 : i32
    %5 = vector.broadcast %4 : i32 to vector<16x1xi32>
    %6 = arith.remsi %2, %5 : vector<16x1xi32>
    %c0_i32_2 = arith.constant 0 : i32
    %7 = vector.broadcast %c0_i32_2 : i32 to vector<16x1xi32>
    %8 = arith.cmpi ne, %6, %7 : vector<16x1xi32>
    %c0_i32_3 = arith.constant 0 : i32
    %9 = vector.broadcast %c0_i32_3 : i32 to vector<16x1xi32>
    %10 = arith.cmpi slt, %6, %9 : vector<16x1xi32>
    %c0_i32_4 = arith.constant 0 : i32
    %11 = arith.cmpi slt, %4, %c0_i32_4 : i32
    %12 = vector.broadcast %11 : i1 to vector<16x1xi1>
    %13 = vector.broadcast %12 : vector<16x1xi1> to vector<16x1xi1>
    %14 = arith.xori %10, %13 : vector<16x1xi1>
    %15 = arith.andi %14, %8 : vector<16x1xi1>
    %16 = vector.broadcast %4 : i32 to vector<16x1xi32>
    %17 = arith.addi %6, %16 : vector<16x1xi32>
    %18 = arith.select %15, %17, %6 : vector<16x1xi1>, vector<16x1xi32>
    %c0_i32_5 = arith.constant 0 : i32
    %19 = vector.broadcast %c0_i32_5 : i32 to vector<16x1xi32>
    %20 = arith.cmpi ne, %18, %19 : vector<16x1xi32>
    %c16_i32_6 = arith.constant 16 : i32
    %c0_i32_7 = arith.constant 0 : i32
    %21 = arith.cmpi eq, %c16_i32_6, %c0_i32_7 : i32
    %c1_i32_8 = arith.constant 1 : i32
    %22 = arith.select %21, %c1_i32_8, %c16_i32_6 : i32
    %23 = vector.broadcast %22 : i32 to vector<16x1xi32>
    %24 = arith.remsi %2, %23 : vector<16x1xi32>
    %c0_i32_9 = arith.constant 0 : i32
    %25 = vector.broadcast %c0_i32_9 : i32 to vector<16x1xi32>
    %26 = arith.cmpi ne, %24, %25 : vector<16x1xi32>
    %c0_i32_10 = arith.constant 0 : i32
    %27 = vector.broadcast %c0_i32_10 : i32 to vector<16x1xi32>
    %28 = arith.cmpi slt, %24, %27 : vector<16x1xi32>
    %c0_i32_11 = arith.constant 0 : i32
    %29 = arith.cmpi slt, %22, %c0_i32_11 : i32
    %30 = vector.broadcast %29 : i1 to vector<16x1xi1>
    %31 = vector.broadcast %30 : vector<16x1xi1> to vector<16x1xi1>
    %32 = arith.xori %28, %31 : vector<16x1xi1>
    %33 = arith.andi %32, %26 : vector<16x1xi1>
    %34 = vector.broadcast %22 : i32 to vector<16x1xi32>
    %35 = arith.addi %24, %34 : vector<16x1xi32>
    %36 = arith.select %33, %35, %24 : vector<16x1xi1>, vector<16x1xi32>
    %c15_i32 = arith.constant 15 : i32
    %37 = vector.broadcast %c15_i32 : i32 to vector<16x1xi32>
    %38 = arith.cmpi ne, %36, %37 : vector<16x1xi32>
    %cst = arith.constant 0.000000e+00 : f32
    %39 = vector.broadcast %cst : f32 to vector<1x64xf32>
    %40 = vector.extract_strided_slice %1 {offsets = [0, 0], sizes = [15, 64], strides = [1, 1]} : vector<16x64xf32> to vector<15x64xf32>
    %41 = tpu.concatenate %39, %40 in 0 : vector<1x64xf32>, vector<15x64xf32> -> vector<16x64xf32>
    %cst_12 = arith.constant 0.000000e+00 : f32
    %42 = vector.shape_cast %20 : vector<16x1xi1> to vector<16x1xi1>
    %43 = vector.broadcast %42 : vector<16x1xi1> to vector<16x64xi1>
    %44 = vector.broadcast %cst_12 : f32 to vector<16x64xf32>
    %45 = arith.select %43, %41, %44 : vector<16x64xi1>, vector<16x64xf32>
    %46 = vector.extract_strided_slice %1 {offsets = [1, 0], sizes = [15, 64], strides = [1, 1]} : vector<16x64xf32> to vector<15x64xf32>
    %47 = tpu.concatenate %46, %39 in 0 : vector<15x64xf32>, vector<1x64xf32> -> vector<16x64xf32>
    %cst_13 = arith.constant 0.000000e+00 : f32
    %48 = vector.shape_cast %38 : vector<16x1xi1> to vector<16x1xi1>
    %49 = vector.broadcast %48 : vector<16x1xi1> to vector<16x64xi1>
    %50 = vector.broadcast %cst_13 : f32 to vector<16x64xf32>
    %51 = arith.select %49, %47, %50 : vector<16x64xi1>, vector<16x64xf32>
    %c0_14 = arith.constant 0 : index
    %c0_15 = arith.constant 0 : index
    %c0_16 = arith.constant 0 : index
    %52 = vector.load %arg2[%c0_14, %c0_15, %c0_16] : memref<3x64x128xf32, #tpu.memory_space<vmem>>, vector<1x64x128xf32>
    %53 = vector.shape_cast %52 : vector<1x64x128xf32> to vector<64x128xf32>
    %cst_17 = arith.constant dense<0.000000e+00> : vector<16x128xf32>
    %54 = tpu.matmul %45, %53, %cst_17 {dimension_numbers = #tpu.dot_dimension_numbers<[1], [0], [0], [1], [0, 0, 1, 1], [], []>} : vector<16x64xf32>, vector<64x128xf32>, vector<16x128xf32> -> vector<16x128xf32>
    %c1 = arith.constant 1 : index
    %c0_18 = arith.constant 0 : index
    %c0_19 = arith.constant 0 : index
    %55 = vector.load %arg2[%c1, %c0_18, %c0_19] : memref<3x64x128xf32, #tpu.memory_space<vmem>>, vector<1x64x128xf32>
    %56 = vector.shape_cast %55 : vector<1x64x128xf32> to vector<64x128xf32>
    %cst_20 = arith.constant dense<0.000000e+00> : vector<16x128xf32>
    %57 = tpu.matmul %1, %56, %cst_20 {dimension_numbers = #tpu.dot_dimension_numbers<[1], [0], [0], [1], [0, 0, 1, 1], [], []>} : vector<16x64xf32>, vector<64x128xf32>, vector<16x128xf32> -> vector<16x128xf32>
    %58 = arith.addf %54, %57 : vector<16x128xf32>
    %c2 = arith.constant 2 : index
    %c0_21 = arith.constant 0 : index
    %c0_22 = arith.constant 0 : index
    %59 = vector.load %arg2[%c2, %c0_21, %c0_22] : memref<3x64x128xf32, #tpu.memory_space<vmem>>, vector<1x64x128xf32>
    %60 = vector.shape_cast %59 : vector<1x64x128xf32> to vector<64x128xf32>
    %cst_23 = arith.constant dense<0.000000e+00> : vector<16x128xf32>
    %61 = tpu.matmul %51, %60, %cst_23 {dimension_numbers = #tpu.dot_dimension_numbers<[1], [0], [0], [1], [0, 0, 1, 1], [], []>} : vector<16x64xf32>, vector<64x128xf32>, vector<16x128xf32> -> vector<16x128xf32>
    %62 = arith.addf %58, %61 : vector<16x128xf32>
    %c0_24 = arith.constant 0 : index
    %c0_25 = arith.constant 0 : index
    %63 = vector.load %arg3[%c0_24, %c0_25] : memref<1x128xf32, #tpu.memory_space<vmem>>, vector<1x128xf32>
    %64 = vector.broadcast %63 : vector<1x128xf32> to vector<16x128xf32>
    %65 = arith.addf %62, %64 : vector<16x128xf32>
    %cst_26 = arith.constant 0.000000e+00 : f32
    %66 = vector.broadcast %cst_26 : f32 to vector<16x128xf32>
    %67 = arith.maximumf %65, %66 : vector<16x128xf32>
    %cst_27 = arith.constant 0.000000e+00 : f32
    %68 = vector.broadcast %cst_27 : f32 to vector<1x128xf32>
    %69 = vector.extract_strided_slice %67 {offsets = [0, 0], sizes = [15, 128], strides = [1, 1]} : vector<16x128xf32> to vector<15x128xf32>
    %70 = tpu.concatenate %68, %69 in 0 : vector<1x128xf32>, vector<15x128xf32> -> vector<16x128xf32>
    %cst_28 = arith.constant 0.000000e+00 : f32
    %71 = vector.shape_cast %20 : vector<16x1xi1> to vector<16x1xi1>
    %72 = vector.broadcast %71 : vector<16x1xi1> to vector<16x128xi1>
    %73 = vector.broadcast %cst_28 : f32 to vector<16x128xf32>
    %74 = arith.select %72, %70, %73 : vector<16x128xi1>, vector<16x128xf32>
    %75 = vector.extract_strided_slice %67 {offsets = [1, 0], sizes = [15, 128], strides = [1, 1]} : vector<16x128xf32> to vector<15x128xf32>
    %76 = tpu.concatenate %75, %68 in 0 : vector<15x128xf32>, vector<1x128xf32> -> vector<16x128xf32>
    %cst_29 = arith.constant 0.000000e+00 : f32
    %77 = vector.shape_cast %38 : vector<16x1xi1> to vector<16x1xi1>
    %78 = vector.broadcast %77 : vector<16x1xi1> to vector<16x128xi1>
    %79 = vector.broadcast %cst_29 : f32 to vector<16x128xf32>
    %80 = arith.select %78, %76, %79 : vector<16x128xi1>, vector<16x128xf32>
    %c0_30 = arith.constant 0 : index
    %c0_31 = arith.constant 0 : index
    %c0_32 = arith.constant 0 : index
    %81 = vector.load %arg4[%c0_30, %c0_31, %c0_32] : memref<3x128x128xf32, #tpu.memory_space<vmem>>, vector<1x128x128xf32>
    %82 = vector.shape_cast %81 : vector<1x128x128xf32> to vector<128x128xf32>
    %cst_33 = arith.constant dense<0.000000e+00> : vector<16x128xf32>
    %83 = tpu.matmul %74, %82, %cst_33 {dimension_numbers = #tpu.dot_dimension_numbers<[1], [0], [0], [1], [0, 0, 1, 1], [], []>} : vector<16x128xf32>, vector<128x128xf32>, vector<16x128xf32> -> vector<16x128xf32>
    %c1_34 = arith.constant 1 : index
    %c0_35 = arith.constant 0 : index
    %c0_36 = arith.constant 0 : index
    %84 = vector.load %arg4[%c1_34, %c0_35, %c0_36] : memref<3x128x128xf32, #tpu.memory_space<vmem>>, vector<1x128x128xf32>
    %85 = vector.shape_cast %84 : vector<1x128x128xf32> to vector<128x128xf32>
    %cst_37 = arith.constant dense<0.000000e+00> : vector<16x128xf32>
    %86 = tpu.matmul %67, %85, %cst_37 {dimension_numbers = #tpu.dot_dimension_numbers<[1], [0], [0], [1], [0, 0, 1, 1], [], []>} : vector<16x128xf32>, vector<128x128xf32>, vector<16x128xf32> -> vector<16x128xf32>
    %87 = arith.addf %83, %86 : vector<16x128xf32>
    %c2_38 = arith.constant 2 : index
    %c0_39 = arith.constant 0 : index
    %c0_40 = arith.constant 0 : index
    %88 = vector.load %arg4[%c2_38, %c0_39, %c0_40] : memref<3x128x128xf32, #tpu.memory_space<vmem>>, vector<1x128x128xf32>
    %89 = vector.shape_cast %88 : vector<1x128x128xf32> to vector<128x128xf32>
    %cst_41 = arith.constant dense<0.000000e+00> : vector<16x128xf32>
    %90 = tpu.matmul %80, %89, %cst_41 {dimension_numbers = #tpu.dot_dimension_numbers<[1], [0], [0], [1], [0, 0, 1, 1], [], []>} : vector<16x128xf32>, vector<128x128xf32>, vector<16x128xf32> -> vector<16x128xf32>
    %91 = arith.addf %87, %90 : vector<16x128xf32>
    %c0_42 = arith.constant 0 : index
    %c0_43 = arith.constant 0 : index
    %92 = vector.load %arg5[%c0_42, %c0_43] : memref<1x128xf32, #tpu.memory_space<vmem>>, vector<1x128xf32>
    %93 = vector.broadcast %92 : vector<1x128xf32> to vector<16x128xf32>
    %94 = arith.addf %91, %93 : vector<16x128xf32>
    %cst_44 = arith.constant 0.000000e+00 : f32
    %95 = vector.broadcast %cst_44 : f32 to vector<16x128xf32>
    %96 = arith.maximumf %94, %95 : vector<16x128xf32>
    %97 = vector.shape_cast %96 : vector<16x128xf32> to vector<1x16x128xf32>
    %c0_45 = arith.constant 0 : index
    %c0_46 = arith.constant 0 : index
    %c0_47 = arith.constant 0 : index
    %98 = vector.load %arg6[%c0_45, %c0_46, %c0_47] : memref<1x16x128xf32, #tpu.memory_space<vmem>>, vector<1x16x128xf32>
    tpu.vector_store %arg6[%c0_45, %c0_46, %c0_47], %97 {strides = array<i32>} : memref<1x16x128xf32, #tpu.memory_space<vmem>>, vector<1x16x128xf32>,
    return
  }
  func.func @transform_0(%arg0: i32) -> (i32, i32, i32) {
    %c0_i32 = arith.constant 0 : i32
    %c0_i32_0 = arith.constant 0 : i32
    %c0_i32_1 = arith.constant 0 : i32
    return %arg0, %c0_i32, %c0_i32_0 : i32, i32, i32
  }
  func.func @transform_1(%arg0: i32) -> (i32, i32, i32) {
    %c0_i32 = arith.constant 0 : i32
    %c0_i32_0 = arith.constant 0 : i32
    %c0_i32_1 = arith.constant 0 : i32
    %c0_i32_2 = arith.constant 0 : i32
    return %c0_i32, %c0_i32_0, %c0_i32_1 : i32, i32, i32
  }
  func.func @transform_2(%arg0: i32) -> (i32, i32) {
    %c0_i32 = arith.constant 0 : i32
    %c0_i32_0 = arith.constant 0 : i32
    %c0_i32_1 = arith.constant 0 : i32
    return %c0_i32, %c0_i32_0 : i32, i32
  }
  func.func @transform_3(%arg0: i32) -> (i32, i32, i32) {
    %c0_i32 = arith.constant 0 : i32
    %c0_i32_0 = arith.constant 0 : i32
    %c0_i32_1 = arith.constant 0 : i32
    %c0_i32_2 = arith.constant 0 : i32
    return %c0_i32, %c0_i32_0, %c0_i32_1 : i32, i32, i32
  }
  func.func @transform_4(%arg0: i32) -> (i32, i32) {
    %c0_i32 = arith.constant 0 : i32
    %c0_i32_0 = arith.constant 0 : i32
    %c0_i32_1 = arith.constant 0 : i32
    return %c0_i32, %c0_i32_0 : i32, i32
  }
  func.func @transform_5(%arg0: i32) -> (i32, i32, i32) {
    %c0_i32 = arith.constant 0 : i32
    %c0_i32_0 = arith.constant 0 : i32
    %c0_i32_1 = arith.constant 0 : i32
    return %arg0, %c0_i32, %c0_i32_0 : i32, i32, i32
  }
}

</mosaic_0001>

<llo_original>
// kernel: tpu_custom_call.1
$region0: #{tpu_custom_call.1}
  #allocation0 [shape = 'u32[]', space=smem, size = 0x4, offset = 0x4, fixed_abs, tag = 'smem constant byte address 0x4 - core index']
  #allocation1 [shape = 'u32[72,128]{1,0:T(1,128)}', space=vmem, size = 0x9000, scoped, tag = 'internal scratch']
  %s0 = inlined_call_operand.hbm [shape: f32[2,16,64], index: 0, kind: input, shape index: {}]
  %s1 = inlined_call_operand.hbm [shape: f32[3,64,128], index: 1, kind: input, shape index: {}]
  %s2 = inlined_call_operand.vmem [shape: f32[1,128], index: 2, kind: input, shape index: {}]
  %s3 = inlined_call_operand.hbm [shape: f32[3,128,128], index: 3, kind: input, shape index: {}]
  %s4 = inlined_call_operand.vmem [shape: f32[1,128], index: 4, kind: input, shape index: {}]
  %s5 = inlined_call_operand.hbm [shape: f32[2,16,128], index: 5, kind: output, shape index: {}]
  %s6 = sld [smem:[#allocation0]]
  $region65: #{tpu_custom_call.1} parent=0
    _
  %s8 = ssub.s32 1, %s6
  %s9 = scalar_select 0, %s8, %s6
  $region1: #{tpu_custom_call.1} parent=0
    #allocation2 [shape = 'u8[16384]{0}', space=vmem, size = 0x4000, scoped, tag = 'input window, operand 0']
    #allocation3 [shape = 's32[2]{0}', space=sflag, size = 0x8, scoped, tag = 'scoped memory for tpu_custom_call.1']
    #allocation4 [shape = 's32[2]{0}', space=sflag, size = 0x8, scoped, tag = 'scoped memory for tpu_custom_call.1']
    #allocation5 [shape = 'u8[98304]{0}', space=vmem, size = 0x18000, scoped, tag = 'input window, operand 1, single buffered']
    #allocation6 [shape = 's32[1]{0}', space=sflag, size = 0x4, scoped, tag = 'scoped memory for tpu_custom_call.1']
    #allocation7 [shape = 'u8[196608]{0}', space=vmem, size = 0x30000, scoped, tag = 'input window, operand 3, single buffered']
    #allocation8 [shape = 'u8[16384]{0}', space=vmem, size = 0x4000, scoped, tag = 'output window, operand 0']
    %10 = vsyncpa [#allocation3], 0
    %s11 = scalar_lea.sflag [#allocation3], 1
    %12 = vsyncpa %s11, 0
    %13 = vsyncpa [#allocation6], 0
    %14 = vsyncpa [#allocation4], 0
    %s15 = scalar_lea.sflag [#allocation4], 1
    %16 = vsyncpa %s15, 0
    loop: start=0, step=1, limit=4
    $region2: #{tpu_custom_call.1} parent=1 // loop_pre_header
      _
    $region3: #{tpu_custom_call.1} parent=1 // loop_header
      %s18 = sphi 0, %s22
      %p19 = scmp.ge.s32.totalorder %s18, 4
      %s28 = sphi 0, %s30
      %s31 = sphi 0, %s28
      %s32 = sphi 0, %s31
      %s48 = sphi 0, %s32
      %s52 = sphi 0, %s52
      %s54 = sphi 0, %s52
      %s55 = sphi 0, %s54
      %s69 = sphi 0, %s55
      %s73 = sphi 0, %s73
      %s75 = sphi 0, %s73
      %s76 = sphi 0, %s75
      %s90 = sphi 0, %s76
      %s94 = sphi 0, %s94
      %s96 = sphi 0, %s94
      %s97 = sphi 0, %s96
      %s111 = sphi 0, %s97
      %s115 = sphi 0, %s115
      %s117 = sphi 0, %s115
      %s118 = sphi 0, %s117
      %s132 = sphi 0, %s118
      %s138 = sphi 0, %s140
      %s141 = sphi 0, %s138
      %s142 = sphi 0, %s141
      %s158 = sphi 0, %s142
    $region4: #{tpu_custom_call.1} parent=1 // loop_header_branch
      %21 = sbr.rel (%p19) target = $region8
    $region5: #{tpu_custom_call.1} parent=1 // loop_body
      %s23 = ssub.s32 %s18, 1
      %s24 = ssub.s32 %s18, 2
      %s25 = sadd.s32 %s18, 1
      %s26 = ssub.s32 %s18, %s25
      %p27 = scmp.eq.s32.totalorder %s26, 0
      %s29 = sadd.s32 %s28, 1
      %s30 = scalar_select %p27, %s28, %s29
      %p33 = pneg %p27
      %p34 = scmp.eq.s32.totalorder %s18, 1
      %p35 = por %p33, %p34
      %p36 = scmp.ne.s32.totalorder %s28, %s31
      %p37 = scmp.eq.s32.totalorder %s18, 0
      %p38 = por %p36, %p37
      %p39 = scmp.ne.s32.totalorder %s28, %s31
      %p40 = scmp.eq.s32.totalorder %s23, 1
      %p41 = por %p39, %p40
      %p42 = scmp.ne.s32.totalorder %s31, %s32
      %p43 = scmp.eq.s32.totalorder %s23, 0
      %p44 = por %p42, %p43
      %p45 = scmp.ne.s32.totalorder %s31, %s32
      %p46 = scmp.eq.s32.totalorder %s24, 1
      %p47 = por %p45, %p46
      %p49 = scmp.ne.s32.totalorder %s32, %s48
      %p50 = scmp.eq.s32.totalorder %s24, 0
      %p51 = por %p49, %p50
      %s53 = sadd.s32 %s52, 1
      %p56 = scmp.eq.s32.totalorder %s18, 1
      %p57 = scmp.ne.s32.totalorder %s52, %s54
      %p58 = scmp.eq.s32.totalorder %s18, 0
      %p59 = por %p57, %p58
      %p60 = scmp.ne.s32.totalorder %s52, %s54
      %p61 = scmp.eq.s32.totalorder %s23, 1
      %p62 = por %p60, %p61
      %p63 = scmp.ne.s32.totalorder %s54, %s55
      %p64 = scmp.eq.s32.totalorder %s23, 0
      %p65 = por %p63, %p64
      %p66 = scmp.ne.s32.totalorder %s54, %s55
      %p67 = scmp.eq.s32.totalorder %s24, 1
      %p68 = por %p66, %p67
      %p70 = scmp.ne.s32.totalorder %s55, %s69
      %p71 = scmp.eq.s32.totalorder %s24, 0
      %p72 = por %p70, %p71
      %s74 = sadd.s32 %s73, 1
      %p77 = scmp.eq.s32.totalorder %s18, 1
      %p78 = scmp.ne.s32.totalorder %s73, %s75
      %p79 = scmp.eq.s32.totalorder %s18, 0
      %p80 = por %p78, %p79
      %p81 = scmp.ne.s32.totalorder %s73, %s75
      %p82 = scmp.eq.s32.totalorder %s23, 1
      %p83 = por %p81, %p82
      %p84 = scmp.ne.s32.totalorder %s75, %s76
      %p85 = scmp.eq.s32.totalorder %s23, 0
      %p86 = por %p84, %p85
      %p87 = scmp.ne.s32.totalorder %s75, %s76
      %p88 = scmp.eq.s32.totalorder %s24, 1
      %p89 = por %p87, %p88
      %p91 = scmp.ne.s32.totalorder %s76, %s90
      %p92 = scmp.eq.s32.totalorder %s24, 0
      %p93 = por %p91, %p92
      %s95 = sadd.s32 %s94, 1
      %p98 = scmp.eq.s32.totalorder %s18, 1
      %p99 = scmp.ne.s32.totalorder %s94, %s96
      %p100 = scmp.eq.s32.totalorder %s18, 0
      %p101 = por %p99, %p100
      %p102 = scmp.ne.s32.totalorder %s94, %s96
      %p103 = scmp.eq.s32.totalorder %s23, 1
      %p104 = por %p102, %p103
      %p105 = scmp.ne.s32.totalorder %s96, %s97
      %p106 = scmp.eq.s32.totalorder %s23, 0
      %p107 = por %p105, %p106
      %p108 = scmp.ne.s32.totalorder %s96, %s97
      %p109 = scmp.eq.s32.totalorder %s24, 1
      %p110 = por %p108, %p109
      %p112 = scmp.ne.s32.totalorder %s97, %s111
      %p113 = scmp.eq.s32.totalorder %s24, 0
      %p114 = por %p112, %p113
      %s116 = sadd.s32 %s115, 1
      %p119 = scmp.eq.s32.totalorder %s18, 1
      %p120 = scmp.ne.s32.totalorder %s115, %s117
      %p121 = scmp.eq.s32.totalorder %s18, 0
      %p122 = por %p120, %p121
      %p123 = scmp.ne.s32.totalorder %s115, %s117
      %p124 = scmp.eq.s32.totalorder %s23, 1
      %p125 = por %p123, %p124
      %p126 = scmp.ne.s32.totalorder %s117, %s118
      %p127 = scmp.eq.s32.totalorder %s23, 0
      %p128 = por %p126, %p127
      %p129 = scmp.ne.s32.totalorder %s117, %s118
      %p130 = scmp.eq.s32.totalorder %s24, 1
      %p131 = por %p129, %p130
      %p133 = scmp.ne.s32.totalorder %s118, %s132
      %p134 = scmp.eq.s32.totalorder %s24, 0
      %p135 = por %p133, %p134
      %s136 = ssub.s32 %s18, %s25
      %p137 = scmp.eq.s32.totalorder %s136, 0
      %s139 = sadd.s32 %s138, 1
      %s140 = scalar_select %p137, %s138, %s139
      %p143 = pneg %p137
      %p144 = scmp.eq.s32.totalorder %s18, 1
      %p145 = por %p143, %p144
      %p146 = scmp.ne.s32.totalorder %s138, %s141
      %p147 = scmp.eq.s32.totalorder %s18, 0
      %p148 = por %p146, %p147
      %p149 = scmp.ne.s32.totalorder %s138, %s141
      %p150 = scmp.eq.s32.totalorder %s23, 1
      %p151 = por %p149, %p150
      %p152 = scmp.ne.s32.totalorder %s141, %s142
      %p153 = scmp.eq.s32.totalorder %s23, 0
      %p154 = por %p152, %p153
      %p155 = scmp.ne.s32.totalorder %s141, %s142
      %p156 = scmp.eq.s32.totalorder %s24, 1
      %p157 = por %p155, %p156
      %p159 = scmp.ne.s32.totalorder %s142, %s158
      %p160 = scmp.eq.s32.totalorder %s24, 0
      %p161 = por %p159, %p160
      %p162 = scmp.le.s32.totalorder 1, %s18
      %p163 = scmp.lt.s32.totalorder %s18, 3
      %p164 = pnand %p162, %p163
      %p165 = pneg %p164
      // Predicated region
      $region9: #{tpu_custom_call.1} parent=5 // pred_check
        _
      $region10: #{tpu_custom_call.1} parent=5 // pred_check_branch
        %167 = sbr.rel (%p164) target = $region12
      $region11: #{tpu_custom_call.1} parent=5 // pred_region
        %s168 = ssub.s32 %s18, 1
        // Predicated region
        $region13: #{tpu_custom_call.1} parent=11 // pred_check
          %p169 = pneg %p65
        $region14: #{tpu_custom_call.1} parent=11 // pred_check_branch
          %171 = sbr.rel (%p169) target = $region16
        $region15: #{tpu_custom_call.1} parent=11 // pred_region
          %173 = vsyncadd [#allocation6], 0
          %s174 = sshll.u32 %s1, 4
          %s175 = int_to_ptr.hbm [resolvable:$true] %s174
          %s176 = sshll.u32 [#allocation5], 4
          %s177 = int_to_ptr.vmem [resolvable:$true] %s176
          %182 = dma.hbm_to_vmem [thread:$0]  %s175, 3072, %s177, [#allocation6], 128, 128, 8
        $region16: #{tpu_custom_call.1} parent=11 // pred_fallthru
          _
        // Predicated region
        $region17: #{tpu_custom_call.1} parent=11 // pred_check
          %p183 = pneg %p86
        $region18: #{tpu_custom_call.1} parent=11 // pred_check_branch
          %185 = sbr.rel (%p183) target = $region20
        $region19: #{tpu_custom_call.1} parent=11 // pred_region
          _
        $region20: #{tpu_custom_call.1} parent=11 // pred_fallthru
          _
        // Predicated region
        $region21: #{tpu_custom_call.1} parent=11 // pred_check
          %p186 = pneg %p107
        $region22: #{tpu_custom_call.1} parent=11 // pred_check_branch
          %188 = sbr.rel (%p186) target = $region24
        $region23: #{tpu_custom_call.1} parent=11 // pred_region
          %190 = vsyncadd [#allocation6], 0
          %s191 = sshll.u32 %s3, 4
          %s192 = int_to_ptr.hbm [resolvable:$true] %s191
          %s193 = sshll.u32 [#allocation7], 4
          %s194 = int_to_ptr.vmem [resolvable:$true] %s193
          %199 = dma.hbm_to_vmem [thread:$0]  %s192, 6144, %s194, [#allocation6], 128, 128, 8
        $region24: #{tpu_custom_call.1} parent=11 // pred_fallthru
          _
        // Predicated region
        $region25: #{tpu_custom_call.1} parent=11 // pred_check
          %p200 = pneg %p128
        $region26: #{tpu_custom_call.1} parent=11 // pred_check_branch
          %202 = sbr.rel (%p200) target = $region28
        $region27: #{tpu_custom_call.1} parent=11 // pred_region
          _
        $region28: #{tpu_custom_call.1} parent=11 // pred_fallthru
          _
      $region12: #{tpu_custom_call.1} parent=5 // pred_fallthru
        _
      %p203 = scmp.lt.s32.totalorder %s18, 2
      // Predicated region
      $region29: #{tpu_custom_call.1} parent=5 // pred_check
        %p204 = pneg %p203
      $region30: #{tpu_custom_call.1} parent=5 // pred_check_branch
        %206 = sbr.rel (%p204) target = $region32
      $region31: #{tpu_custom_call.1} parent=5 // pred_region
        // Predicated region
        $region33: #{tpu_custom_call.1} parent=31 // pred_check
          %p207 = pneg %p38
        $region34: #{tpu_custom_call.1} parent=31 // pred_check_branch
          %209 = sbr.rel (%p207) target = $region36
        $region35: #{tpu_custom_call.1} parent=31 // pred_region
          %s210 = sand.u32 %s28, 1
          %s211 = scalar_lea.sflag [#allocation3], %s210
          %s212 = sand.u32 %s28, 1
          %s213 = smul.addr %s212, 16
          %s214 = scalar_lea.vmem [#allocation2], %s213
          %216 = vsyncadd %s211, 0
          %s217 = smul.addr %s18, 2
          %s218 = smul.addr %s217, 8
          %s219 = scalar_lea.hbm %s0, %s218
          %s220 = sshll.u32 %s219, 4
          %s221 = int_to_ptr.hbm [resolvable:$true] %s220
          %s222 = sshll.u32 %s214, 4
          %s223 = int_to_ptr.vmem [resolvable:$true] %s222
          %228 = dma.hbm_to_vmem [thread:$0]  %s221, 256, %s223, %s211, 128, 128, 8
        $region36: #{tpu_custom_call.1} parent=31 // pred_fallthru
          _
      $region32: #{tpu_custom_call.1} parent=5 // pred_fallthru
        _
      %p229 = scmp.le.s32.totalorder 1, %s18
      %p230 = scmp.lt.s32.totalorder %s18, 3
      %p231 = pnand %p229, %p230
      %p232 = pneg %p231
      // Predicated region
      $region37: #{tpu_custom_call.1} parent=5 // pred_check
        _
      $region38: #{tpu_custom_call.1} parent=5 // pred_check_branch
        %234 = sbr.rel (%p231) target = $region40
      $region39: #{tpu_custom_call.1} parent=5 // pred_region
        %s235 = ssub.s32 %s18, 1
        %s236 = sand.u32 %s31, 1
        %s237 = scalar_lea.sflag [#allocation3], %s236
        %s238 = sand.u32 %s31, 1
        %s239 = smul.addr %s238, 16
        %s240 = scalar_lea.vmem [#allocation2], %s239
        // Predicated region
        $region41: #{tpu_custom_call.1} parent=39 // pred_check
          %p241 = pneg %p44
        $region42: #{tpu_custom_call.1} parent=39 // pred_check_branch
          %243 = sbr.rel (%p241) target = $region44
        $region43: #{tpu_custom_call.1} parent=39 // pred_region
          %245 = dma.done %s237, 256
        $region44: #{tpu_custom_call.1} parent=39 // pred_fallthru
          _
        // Predicated region
        $region45: #{tpu_custom_call.1} parent=39 // pred_check
          %p246 = pneg %p65
        $region46: #{tpu_custom_call.1} parent=39 // pred_check_branch
          %248 = sbr.rel (%p246) target = $region48
        $region47: #{tpu_custom_call.1} parent=39 // pred_region
          %250 = dma.done [#allocation6], 3072
        $region48: #{tpu_custom_call.1} parent=39 // pred_fallthru
          _
        // Predicated region
        $region49: #{tpu_custom_call.1} parent=39 // pred_check
          %p251 = pneg %p107
        $region50: #{tpu_custom_call.1} parent=39 // pred_check_branch
          %253 = sbr.rel (%p251) target = $region52
        $region51: #{tpu_custom_call.1} parent=39 // pred_region
          %255 = dma.done [#allocation6], 6144
        $region52: #{tpu_custom_call.1} parent=39 // pred_fallthru
          _
        %s256 = sand.u32 %s31, 1
        %s257 = scalar_lea.sflag [#allocation3], %s256
        %s258 = sand.u32 %s31, 1
        %s259 = smul.addr %s258, 16
        %s260 = scalar_lea.vmem [#allocation2], %s259
        %p261 = pneg %p44
        %p262 = pneg %p41
        %p263 = pneg %p65
        %p264 = pneg %p62
        %p265 = pneg %p86
        %p266 = pneg %p83
        %p267 = pneg %p107
        %p268 = pneg %p104
        %p269 = pneg %p128
        %p270 = pneg %p125
        %p271 = pneg %p154
        %p272 = pneg %p151
        %s273 = sand.u32 %s141, 1
        %s274 = scalar_lea.sflag [#allocation4], %s273
        %s275 = sand.u32 %s141, 1
        %s276 = smul.addr %s275, 16
        %s277 = scalar_lea.vmem [#allocation8], %s276
        %v278 = vld [vmem:[%s240] sm:$0xff]
        %v279 = vld [vmem:[%s240 + $0x8] sm:$0xff]
        %v280 = vlaneseq
        %v281 = vshrl.u32 %v280, 7
        %v282 = vadd.s32 %v281, 8
        %vm283 = vcmp.lt.s32.totalorder %v281, 0
        %v284 = vsub.s32 0, %v281
        %v285 = vsel %vm283, %v284, %v281
        %v286 = vshrl.u32 %v285, 4
        %v287 = vand.u32 %v285, 15
        %v288 = vsub.s32 0, %v287
        %v289 = vsel %vm283, %v288, %v287
        %vm290 = vcmp.lt.s32.totalorder %v282, 0
        %v291 = vsub.s32 0, %v282
        %v292 = vsel %vm290, %v291, %v282
        %v293 = vshrl.u32 %v292, 4
        %v294 = vand.u32 %v292, 15
        %v295 = vsub.s32 0, %v294
        %v296 = vsel %vm290, %v295, %v294
        %vm297 = vcmp.ne.s32.totalorder %v289, 0
        %vm298 = vcmp.ne.s32.totalorder %v296, 0
        %vm299 = vcmp.lt.s32.totalorder %v289, 0
        %vm300 = vcmp.lt.s32.totalorder %v296, 0
        %vm301 = vmand %vm299, %vm297
        %vm302 = vmand %vm300, %vm298
        %v303 = vadd.s32 %v289, 16
        %v304 = vadd.s32 %v296, 16
        %v305 = vsel %vm301, %v303, %v289
        %v306 = vsel %vm302, %v304, %v296
        %vm307 = vcmp.ne.s32.totalorder %v305, 0
        %vm308 = vcmp.ne.s32.totalorder %v306, 0
        %vm309 = vcmp.ne.s32.totalorder %v305, 15
        %vm310 = vcmp.ne.s32.totalorder %v306, 15
        %vm313 = vcmask 1040384
        %v314 = vrot.slane %v278, 7
        %v315 = vrot.slane %v279, 7
        %v316 = vsel %vm313, %v314, %v315
        %v319 = vsel %vm313, 0.0, %v314
        %v320 = vsel %vm307, 1, 0
        %v321 = vsel %vm308, 1, 0
        %vm322 = vcmp.eq.s32.totalorder %v320, 1
        %vm323 = vcmp.eq.s32.totalorder %v321, 1
        %v324 = vsel %vm322, %v319, 0.0
        %v325 = vsel %vm323, %v316, 0.0
        %vm326 = vcmask 1046528
        %v327 = vrot.slane %v278, 1
        %v328 = vrot.slane %v279, 1
        %v329 = vsel %vm326, %v327, %v328
        %v332 = vsel %vm326, %v328, 0.0
        %v333 = vsel %vm309, 1, 0
        %v334 = vsel %vm310, 1, 0
        %vm335 = vcmp.eq.s32.totalorder %v333, 1
        %vm336 = vcmp.eq.s32.totalorder %v334, 1
        %v337 = vsel %vm335, %v329, 0.0
        %v338 = vsel %vm336, %v332, 0.0
        %v339 = vld [vmem:[#allocation5] sm:$0xff]
        %v340 = vld [vmem:[#allocation5 + $0x8] sm:$0xff]
        %v341 = vld [vmem:[#allocation5 + $0x10] sm:$0xff]
        %v342 = vld [vmem:[#allocation5 + $0x18] sm:$0xff]
        %v343 = vld [vmem:[#allocation5 + $0x20] sm:$0xff]
        %v344 = vld [vmem:[#allocation5 + $0x28] sm:$0xff]
        %v345 = vld [vmem:[#allocation5 + $0x30] sm:$0xff]
        %v346 = vld [vmem:[#allocation5 + $0x38] sm:$0xff]
        %s347 = scalar_lea.vmem [#allocation5], 64
        %v348 = vld [vmem:[%s347] sm:$0xff]
        %v349 = vld [vmem:[%s347 + $0x8] sm:$0xff]
        %v350 = vld [vmem:[%s347 + $0x10] sm:$0xff]
        %v351 = vld [vmem:[%s347 + $0x18] sm:$0xff]
        %v352 = vld [vmem:[%s347 + $0x20] sm:$0xff]
        %v353 = vld [vmem:[%s347 + $0x28] sm:$0xff]
        %v354 = vld [vmem:[%s347 + $0x30] sm:$0xff]
        %v355 = vld [vmem:[%s347 + $0x38] sm:$0xff]
        %vm356 = vcmask 523264
        %v357 = vsel %vm356, %v278, 0
        %v359 = vsel %vm356, %v279, 0
        %361 = vmatpush.msra.mxu0 0.0
        %362 = vmatpush.msra.mxu0 0.0
        %363 = vmatpush.msra.mxu0 0.0
        %364 = vmatpush.msra.mxu0 0.0
        %365 = vmatpush.msra.mxu0 0.0
        %366 = vmatpush.msra.mxu0 0.0
        %367 = vmatpush.msra.mxu0 0.0
        %368 = vmatpush.msra.mxu0 0.0
        %369 = vmatpush.msra.mxu0 %v355
        %370 = vmatpush.msra.mxu0 %v354
        %371 = vmatpush.msra.mxu0 %v353
        %372 = vmatpush.msra.mxu0 %v352
        %373 = vmatpush.msra.mxu0 %v351
        %374 = vmatpush.msra.mxu0 %v350
        %375 = vmatpush.msra.mxu0 %v349
        %376 = vmatpush.msra.mxu0 %v348
        %377 = vmatmul.f32.gmra.mxu0 %v357
        %v378 = vpop.f32.mrf.mxu0
        %v379 = vadd.f32 0.0, %v378
        %380 = vmatmul.f32.gmra.mxu0 %v359
        %v381 = vpop.f32.mrf.mxu0
        %v382 = vadd.f32 0.0, %v381
        %383 = vdwg.mxu0
        %v385 = vsel %vm356, %v324, 0
        %v388 = vsel %vm356, %v325, 0
        %390 = vmatpush.msra.mxu0 0.0
        %391 = vmatpush.msra.mxu0 0.0
        %392 = vmatpush.msra.mxu0 0.0
        %393 = vmatpush.msra.mxu0 0.0
        %394 = vmatpush.msra.mxu0 0.0
        %395 = vmatpush.msra.mxu0 0.0
        %396 = vmatpush.msra.mxu0 0.0
        %397 = vmatpush.msra.mxu0 0.0
        %398 = vmatpush.msra.mxu0 %v346
        %399 = vmatpush.msra.mxu0 %v345
        %400 = vmatpush.msra.mxu0 %v344
        %401 = vmatpush.msra.mxu0 %v343
        %402 = vmatpush.msra.mxu0 %v342
        %403 = vmatpush.msra.mxu0 %v341
        %404 = vmatpush.msra.mxu0 %v340
        %405 = vmatpush.msra.mxu0 %v339
        %406 = vmatmul.f32.gmra.mxu0 %v385
        %v407 = vpop.f32.mrf.mxu0
        %v408 = vadd.f32 %v379, %v407
        %409 = vmatmul.f32.gmra.mxu0 %v388
        %v410 = vpop.f32.mrf.mxu0
        %v411 = vadd.f32 %v382, %v410
        %412 = vdwg.mxu0
        %s413 = scalar_lea.vmem [#allocation5], 128
        %v414 = vld [vmem:[%s413] sm:$0xff]
        %v415 = vld [vmem:[%s413 + $0x8] sm:$0xff]
        %v416 = vld [vmem:[%s413 + $0x10] sm:$0xff]
        %v417 = vld [vmem:[%s413 + $0x18] sm:$0xff]
        %v418 = vld [vmem:[%s413 + $0x20] sm:$0xff]
        %v419 = vld [vmem:[%s413 + $0x28] sm:$0xff]
        %v420 = vld [vmem:[%s413 + $0x30] sm:$0xff]
        %v421 = vld [vmem:[%s413 + $0x38] sm:$0xff]
        %v423 = vsel %vm356, %v337, 0
        %v426 = vsel %vm356, %v338, 0
        %428 = vmatpush.msra.mxu0 0.0
        %429 = vmatpush.msra.mxu0 0.0
        %430 = vmatpush.msra.mxu0 0.0
        %431 = vmatpush.msra.mxu0 0.0
        %432 = vmatpush.msra.mxu0 0.0
        %433 = vmatpush.msra.mxu0 0.0
        %434 = vmatpush.msra.mxu0 0.0
        %435 = vmatpush.msra.mxu0 0.0
        %436 = vmatpush.msra.mxu0 %v421
        %437 = vmatpush.msra.mxu0 %v420
        %438 = vmatpush.msra.mxu0 %v419
        %439 = vmatpush.msra.mxu0 %v418
        %440 = vmatpush.msra.mxu0 %v417
        %441 = vmatpush.msra.mxu0 %v416
        %442 = vmatpush.msra.mxu0 %v415
        %443 = vmatpush.msra.mxu0 %v414
        %444 = vmatmul.f32.gmra.mxu0 %v423
        %v445 = vpop.f32.mrf.mxu0
        %v446 = vadd.f32 0.0, %v445
        %447 = vmatmul.f32.gmra.mxu0 %v426
        %v448 = vpop.f32.mrf.mxu0
        %v449 = vadd.f32 0.0, %v448
        %450 = vdwg.mxu0
        %v451 = vadd.f32 %v408, %v446
        %v452 = vadd.f32 %v411, %v449
        %v453 = vld [vmem:[%s2] sm:$0x1]
        %v455 = vperm.slane %v453, 0
        %v457 = vadd.f32 %v451, %v455
        %v458 = vadd.f32 %v452, %v455
        %v459 = vmax.f32 %v457, 0.0
        %v460 = vmax.f32 %v458, 0.0
        %v463 = vrot.slane %v459, 7
        %v464 = vrot.slane %v460, 7
        %v465 = vsel %vm313, %v463, %v464
        %v468 = vsel %vm313, 0.0, %v463
        %v469 = vsel %vm322, %v468, 0.0
        %v470 = vsel %vm323, %v465, 0.0
        %v471 = vrot.slane %v459, 1
        %v472 = vrot.slane %v460, 1
        %v473 = vsel %vm326, %v471, %v472
        %v476 = vsel %vm326, %v472, 0.0
        %v477 = vsel %vm335, %v473, 0.0
        %v478 = vsel %vm336, %v476, 0.0
        %v479 = vld [vmem:[#allocation7] sm:$0xff]
        %v480 = vld [vmem:[#allocation7 + $0x8] sm:$0xff]
        %v481 = vld [vmem:[#allocation7 + $0x10] sm:$0xff]
        %v482 = vld [vmem:[#allocation7 + $0x18] sm:$0xff]
        %v483 = vld [vmem:[#allocation7 + $0x20] sm:$0xff]
        %v484 = vld [vmem:[#allocation7 + $0x28] sm:$0xff]
        %v485 = vld [vmem:[#allocation7 + $0x30] sm:$0xff]
        %v486 = vld [vmem:[#allocation7 + $0x38] sm:$0xff]
        %v487 = vld [vmem:[#allocation7 + $0x40] sm:$0xff]
        %v488 = vld [vmem:[#allocation7 + $0x48] sm:$0xff]
        %v489 = vld [vmem:[#allocation7 + $0x50] sm:$0xff]
        %v490 = vld [vmem:[#allocation7 + $0x58] sm:$0xff]
        %v491 = vld [vmem:[#allocation7 + $0x60] sm:$0xff]
        %v492 = vld [vmem:[#allocation7 + $0x68] sm:$0xff]
        %v493 = vld [vmem:[#allocation7 + $0x70] sm:$0xff]
        %v494 = vld [vmem:[#allocation7 + $0x78] sm:$0xff]
        %s495 = scalar_lea.vmem [#allocation7], 128
        %v496 = vld [vmem:[%s495] sm:$0xff]
        %v497 = vld [vmem:[%s495 + $0x8] sm:$0xff]
        %v498 = vld [vmem:[%s495 + $0x10] sm:$0xff]
        %v499 = vld [vmem:[%s495 + $0x18] sm:$0xff]
        %v500 = vld [vmem:[%s495 + $0x20] sm:$0xff]
        %v501 = vld [vmem:[%s495 + $0x28] sm:$0xff]
        %v502 = vld [vmem:[%s495 + $0x30] sm:$0xff]
        %v503 = vld [vmem:[%s495 + $0x38] sm:$0xff]
        %v504 = vld [vmem:[%s495 + $0x40] sm:$0xff]
        %v505 = vld [vmem:[%s495 + $0x48] sm:$0xff]
        %v506 = vld [vmem:[%s495 + $0x50] sm:$0xff]
        %v507 = vld [vmem:[%s495 + $0x58] sm:$0xff]
        %v508 = vld [vmem:[%s495 + $0x60] sm:$0xff]
        %v509 = vld [vmem:[%s495 + $0x68] sm:$0xff]
        %v510 = vld [vmem:[%s495 + $0x70] sm:$0xff]
        %v511 = vld [vmem:[%s495 + $0x78] sm:$0xff]
        %512 = vmatpush.msra.mxu0 %v511
        %513 = vmatpush.msra.mxu0 %v510
        %514 = vmatpush.msra.mxu0 %v509
        %515 = vmatpush.msra.mxu0 %v508
        %516 = vmatpush.msra.mxu0 %v507
        %517 = vmatpush.msra.mxu0 %v506
        %518 = vmatpush.msra.mxu0 %v505
        %519 = vmatpush.msra.mxu0 %v504
        %520 = vmatpush.msra.mxu0 %v503
        %521 = vmatpush.msra.mxu0 %v502
        %522 = vmatpush.msra.mxu0 %v501
        %523 = vmatpush.msra.mxu0 %v500
        %524 = vmatpush.msra.mxu0 %v499
        %525 = vmatpush.msra.mxu0 %v498
        %526 = vmatpush.msra.mxu0 %v497
        %527 = vmatpush.msra.mxu0 %v496
        %528 = vmatmul.f32.gmra.mxu0 %v459
        %v529 = vpop.f32.mrf.mxu0
        %v530 = vadd.f32 0.0, %v529
        %531 = vmatmul.f32.gmra.mxu0 %v460
        %v532 = vpop.f32.mrf.mxu0
        %v533 = vadd.f32 0.0, %v532
        %534 = vdwg.mxu0
        %535 = vmatpush.msra.mxu0 %v494
        %536 = vmatpush.msra.mxu0 %v493
        %537 = vmatpush.msra.mxu0 %v492
        %538 = vmatpush.msra.mxu0 %v491
        %539 = vmatpush.msra.mxu0 %v490
        %540 = vmatpush.msra.mxu0 %v489
        %541 = vmatpush.msra.mxu0 %v488
        %542 = vmatpush.msra.mxu0 %v487
        %543 = vmatpush.msra.mxu0 %v486
        %544 = vmatpush.msra.mxu0 %v485
        %545 = vmatpush.msra.mxu0 %v484
        %546 = vmatpush.msra.mxu0 %v483
        %547 = vmatpush.msra.mxu0 %v482
        %548 = vmatpush.msra.mxu0 %v481
        %549 = vmatpush.msra.mxu0 %v480
        %550 = vmatpush.msra.mxu0 %v479
        %551 = vmatmul.f32.gmra.mxu0 %v469
        %v552 = vpop.f32.mrf.mxu0
        %v553 = vadd.f32 %v530, %v552
        %554 = vmatmul.f32.gmra.mxu0 %v470
        %v555 = vpop.f32.mrf.mxu0
        %v556 = vadd.f32 %v533, %v555
        %557 = vdwg.mxu0
        %s558 = scalar_lea.vmem [#allocation7], 256
        %v559 = vld [vmem:[%s558] sm:$0xff]
        %v560 = vld [vmem:[%s558 + $0x8] sm:$0xff]
        %v561 = vld [vmem:[%s558 + $0x10] sm:$0xff]
        %v562 = vld [vmem:[%s558 + $0x18] sm:$0xff]
        %v563 = vld [vmem:[%s558 + $0x20] sm:$0xff]
        %v564 = vld [vmem:[%s558 + $0x28] sm:$0xff]
        %v565 = vld [vmem:[%s558 + $0x30] sm:$0xff]
        %v566 = vld [vmem:[%s558 + $0x38] sm:$0xff]
        %v567 = vld [vmem:[%s558 + $0x40] sm:$0xff]
        %v568 = vld [vmem:[%s558 + $0x48] sm:$0xff]
        %v569 = vld [vmem:[%s558 + $0x50] sm:$0xff]
        %v570 = vld [vmem:[%s558 + $0x58] sm:$0xff]
        %v571 = vld [vmem:[%s558 + $0x60] sm:$0xff]
        %v572 = vld [vmem:[%s558 + $0x68] sm:$0xff]
        %v573 = vld [vmem:[%s558 + $0x70] sm:$0xff]
        %v574 = vld [vmem:[%s558 + $0x78] sm:$0xff]
        %575 = vmatpush.msra.mxu0 %v574
        %576 = vmatpush.msra.mxu0 %v573
        %577 = vmatpush.msra.mxu0 %v572
        %578 = vmatpush.msra.mxu0 %v571
        %579 = vmatpush.msra.mxu0 %v570
        %580 = vmatpush.msra.mxu0 %v569
        %581 = vmatpush.msra.mxu0 %v568
        %582 = vmatpush.msra.mxu0 %v567
        %583 = vmatpush.msra.mxu0 %v566
        %584 = vmatpush.msra.mxu0 %v565
        %585 = vmatpush.msra.mxu0 %v564
        %586 = vmatpush.msra.mxu0 %v563
        %587 = vmatpush.msra.mxu0 %v562
        %588 = vmatpush.msra.mxu0 %v561
        %589 = vmatpush.msra.mxu0 %v560
        %590 = vmatpush.msra.mxu0 %v559
        %591 = vmatmul.f32.gmra.mxu0 %v477
        %v592 = vpop.f32.mrf.mxu0
        %v593 = vadd.f32 0.0, %v592
        %594 = vmatmul.f32.gmra.mxu0 %v478
        %v595 = vpop.f32.mrf.mxu0
        %v596 = vadd.f32 0.0, %v595
        %597 = vdwg.mxu0
        %v598 = vadd.f32 %v553, %v593
        %v599 = vadd.f32 %v556, %v596
        %v600 = vld [vmem:[%s4] sm:$0x1]
        %v602 = vperm.slane %v600, 0
        %v604 = vadd.f32 %v598, %v602
        %v605 = vadd.f32 %v599, %v602
        %v606 = vmax.f32 %v604, 0.0
        %v607 = vmax.f32 %v605, 0.0
        %608 = vst [vmem:[%s277] sm:$0xff] %v606
        %609 = vst [vmem:[%s277 + $0x8] sm:$0xff] %v607
        %s610 = sand.u32 %s141, 1
        %s611 = scalar_lea.sflag [#allocation4], %s610
        %s612 = sand.u32 %s141, 1
        %s613 = smul.addr %s612, 16
        %s614 = scalar_lea.vmem [#allocation8], %s613
        // Predicated region
        $region53: #{tpu_custom_call.1} parent=39 // pred_check
          %p615 = pneg %p151
        $region54: #{tpu_custom_call.1} parent=39 // pred_check_branch
          %617 = sbr.rel (%p615) target = $region56
        $region55: #{tpu_custom_call.1} parent=39 // pred_region
          %619 = vsyncadd %s611, 0
          %s620 = smul.addr %s23, 2
          %s621 = smul.addr %s620, 8
          %s622 = scalar_lea.hbm %s5, %s621
          %s623 = sshll.u32 %s614, 4
          %s624 = int_to_ptr.vmem [resolvable:$true] %s623
          %s625 = sshll.u32 %s622, 4
          %s626 = int_to_ptr.hbm [resolvable:$true] %s625
          %631 = dma.vmem_to_hbm [thread:$0]  %s624, 256, %s626, %s611, 128, 128, 8
        $region56: #{tpu_custom_call.1} parent=39 // pred_fallthru
          _
      $region40: #{tpu_custom_call.1} parent=5 // pred_fallthru
        _
      %p632 = scmp.le.s32.totalorder 2, %s18
      // Predicated region
      $region57: #{tpu_custom_call.1} parent=5 // pred_check
        %p633 = pneg %p632
      $region58: #{tpu_custom_call.1} parent=5 // pred_check_branch
        %635 = sbr.rel (%p633) target = $region60
      $region59: #{tpu_custom_call.1} parent=5 // pred_region
        %s636 = ssub.s32 %s18, 2
        // Predicated region
        $region61: #{tpu_custom_call.1} parent=59 // pred_check
          %p637 = pneg %p157
        $region62: #{tpu_custom_call.1} parent=59 // pred_check_branch
          %639 = sbr.rel (%p637) target = $region64
        $region63: #{tpu_custom_call.1} parent=59 // pred_region
          %s640 = sand.u32 %s142, 1
          %s641 = scalar_lea.sflag [#allocation4], %s640
          %s642 = sand.u32 %s142, 1
          %s643 = smul.addr %s642, 16
          %s644 = scalar_lea.vmem [#allocation8], %s643
          %646 = dma.done %s641, 256
        $region64: #{tpu_custom_call.1} parent=59 // pred_fallthru
          _
      $region60: #{tpu_custom_call.1} parent=5 // pred_fallthru
        _
    $region6: #{tpu_custom_call.1} parent=1 // loop_footer
      %s22 = sadd.s32 1, %s18
    $region7: #{tpu_custom_call.1} parent=1 // loop_footer_branch
      %17 = sbr.rel target = $region3
    $region8: #{tpu_custom_call.1} parent=1 // loop_exit
      _
    %647 = vsyncpa [#allocation3], 1
    %s648 = scalar_lea.sflag [#allocation3], 1
    %649 = vsyncpa %s648, 1
    %650 = vsyncpa [#allocation6], 1
    %651 = vsyncpa [#allocation4], 1
    %s652 = scalar_lea.sflag [#allocation4], 1
    %653 = vsyncpa %s652, 1

</llo_original>
